<compile_context>
chip_gen: v7x
topology: tpu7x:2x2x1
jax: 0.10.0
libtpu: 0.0.40
codegen_flags: <defaults>
</compile_context>

<pallas_src>
import math

import jax
import jax.numpy as jnp
from jax.experimental import pallas as pl
from jax.experimental.pallas import tpu as pltpu


# ----------------------------- kernel -----------------------------

def _cpe_add_kernel(xs_ref, pe_ref, out_ref):
    # xs_ref : VMEM (TILE_ROWS, W)  caller dtype
    # pe_ref : VMEM (1, W)          float32  (precomputed interpolated-PE slab)
    # out_ref: VMEM (TILE_ROWS, W)  caller dtype
    out_ref[...] = (xs_ref[...].astype(jnp.float32) + pe_ref[...]).astype(out_ref.dtype)


# --------------------------- parameter setup ---------------------------

def make_pe_table(dim, maxtime=5.0, num_steps=100):
    """Same buffer as the PyTorch __init__."""
    position = jnp.linspace(0.0, maxtime, num_steps, dtype=jnp.float32)[:, None]   # (S, 1)
    div_term = jnp.exp(jnp.arange(0, dim, 2, dtype=jnp.float32)
                       * (-math.log(10000.0) / dim))                               # (C/2,)
    pe = jnp.zeros((num_steps, dim), dtype=jnp.float32)
    pe = pe.at[:, 0::2].set(jnp.sin(position * div_term))
    pe = pe.at[:, 1::2].set(jnp.cos(position * div_term))
    return pe


# ----------------------------- wrapper -----------------------------

def _choose_tile_rows(rows, width, itemsize, target_bytes=2 * 1024 * 1024):
    """~2 MiB tiles, rows a multiple of 32; prefer >=2 grid steps (v7x's 2nd TC)."""
    if rows <= 32:
        return rows
    t = max(32, (target_bytes // max(1, width * itemsize)) // 32 * 32)
    if t >= rows:
        # Everything fits in one tile: split so the "parallel" N-grid has >=2 steps.
        t = max(32, ((rows + 63) // 64) * 32)
    return int(min(t, rows))


def continuous_pos_encoding(xs, times, pe, *, maxtime=5.0, num_steps=100,
                            tile_rows=None, donate_xs=False):
    """xs: (N, B, C) float dtype, times: (B,), pe: (num_steps, C) -> (N, B, C) in xs.dtype."""
    N, B, C = xs.shape
    BC = B * C

    # ---- Hoisted PE interpolation (O(B*C), independent of N): pure JAX glue. ----
    t = jnp.clip(times.astype(jnp.float32), 0.0, maxtime) * (num_steps - 1) / maxtime
    t_floor = jnp.floor(t)
    idx_f = jnp.clip(t_floor.astype(jnp.int32), 0, num_steps - 1)
    idx_c = jnp.clip(jnp.ceil(t).astype(jnp.int32), 0, num_steps - 1)   # guard OOB reads
    alpha = (t - t_floor)[:, None]
    pe_f32 = pe.astype(jnp.float32)
    pe_interp = (1.0 - alpha) * pe_f32[idx_f] + alpha * pe_f32[idx_c]    # (B, C)
    pe_row = pe_interp.reshape(1, BC)

    # ---- Lane-dense packing: make the last dim a multiple of 128 when N allows. ----
    rep = 128 // math.gcd(BC, 128)          # smallest r with (BC * r) % 128 == 0
    if N % rep == 0:
        rows, W = N // rep, BC * rep
    else:
        rows, W = N, BC                      # fallback: correct, masked partial stores
    xs2 = xs.reshape(rows, W)                # free contiguous reshape, no transpose
    pe_slab = pe_row if W == BC else jnp.tile(pe_row, (1, W // BC))      # (1, W) f32

    if tile_rows is None:
        tile_rows = _choose_tile_rows(rows, W, jnp.dtype(xs.dtype).itemsize)
    tile_rows = int(min(tile_rows, rows))
    grid = (pl.cdiv(rows, tile_rows),)

    out2 = pl.pallas_call(
        _cpe_add_kernel,
        out_shape=jax.ShapeDtypeStruct((rows, W), xs.dtype),
        grid=grid,
        in_specs=[
            # xs: one (tile_rows, W) slab per grid step (auto double-buffered).
            pl.BlockSpec((tile_rows, W), lambda i: (i, 0)),
            # PE slab: constant index_map -> single resident ~0.5 KiB block, no refetch.
            pl.BlockSpec((1, W), lambda i: (0, 0)),
        ],
        out_specs=pl.BlockSpec((tile_rows, W), lambda i: (i, 0)),
        compiler_params=pltpu.CompilerParams(
            dimension_semantics=("parallel",),       # shard N-grid across v7x's 2 TCs
            vmem_limit_bytes=32 * 1024 * 1024,       # safe on v5e/v6e/v7x
        ),
        # Optional in-place write when the caller donates xs (review suggestion).
        input_output_aliases=({0: 0} if donate_xs else {}),
    )(xs2, pe_slab)

    return out2.reshape(N, B, C)


# ----------------------------- reference -----------------------------

def _reference(xs, times, pe, maxtime=5.0, num_steps=100):
    """Pure-JAX reference mirroring the PyTorch forward (dropout in eval mode)."""
    t = jnp.clip(times.astype(jnp.float32), 0.0, maxtime) * (num_steps - 1) / maxtime
    t_floor = jnp.floor(t).astype(jnp.int32)
    t_ceil = jnp.ceil(t).astype(jnp.int32)
    alpha = (t - t_floor.astype(jnp.float32))[:, None]
    pe_interp = (1.0 - alpha) * pe[t_floor] + alpha * pe[t_ceil]
    return (xs.astype(jnp.float32) + pe_interp[None, :, :]).astype(xs.dtype)


# ----------------------------- tests -----------------------------

if __name__ == "__main__":
    MAXTIME, NUM_STEPS = 5.0, 100
    key = jax.random.PRNGKey(0)

    cases = [
        # (N,  B, C,  dtype,        explicit tile_rows)
        (8,   2, 32, jnp.float32,  None),   # BC=64 -> packed to (4,128), single grid step
        (40,  2, 32, jnp.float32,  8),      # rows=20, grid=3 incl. a partial remainder block
        (16,  2, 64, jnp.float32,  None),   # BC=128: already lane-dense
        (7,   3, 20, jnp.float32,  None),   # BC=60, N not divisible by rep -> fallback layout
        (16,  2, 32, jnp.bfloat16, None),   # bf16 I/O, f32 compute inside the kernel
    ]
    for (N, B, C, dtype, tile_rows) in cases:
        key, k_x, k_t = jax.random.split(key, 3)
        xs = jax.random.normal(k_x, (N, B, C), dtype=jnp.float32).astype(dtype)
        times = jax.random.uniform(k_t, (B,), minval=-0.5, maxval=MAXTIME + 0.5,
                                   dtype=jnp.float32)            # exercises the clamp
        pe = make_pe_table(C, MAXTIME, NUM_STEPS)

        out = continuous_pos_encoding(xs, times, pe, maxtime=MAXTIME,
                                      num_steps=NUM_STEPS, tile_rows=tile_rows)
        out = jax.block_until_ready(out)

        ref = _reference(xs, times, pe, MAXTIME, NUM_STEPS)
        assert out.shape == (N, B, C), f"shape mismatch for {(N, B, C, dtype)}"
        assert out.dtype == xs.dtype, f"dtype mismatch for {(N, B, C, dtype)}"
        assert jnp.allclose(out.astype(jnp.float32), ref.astype(jnp.float32),
                            atol=1e-5, rtol=1e-5), f"kernel mismatch for {(N, B, C, dtype)}"

    print("KERNEL_OK")
</pallas_src>

<mosaic_0001>
module attributes {stable_mosaic.version = 11 : i64} {
  func.func @_cpe_add_kernel(%arg0: i32, %arg1: memref<4x128xf32, #tpu.memory_space<vmem>>, %arg2: memref<1x128xf32, #tpu.memory_space<vmem>>, %arg3: memref<4x128xf32, #tpu.memory_space<vmem>>) attributes {dimension_semantics = [#tpu.dimension_semantics<parallel>], iteration_bounds = array<i64: 1>, scalar_prefetch = 0 : i64, scratch_operands = 0 : i64, tpu.core_type = #tpu.core_type<tc>, window_params = [{transform_indices = @transform_0, window_bounds = array<i64: 4, 128>}, {pipeline_mode = #tpu.pipeline_mode<synchronous>, transform_indices = @transform_1, window_bounds = array<i64: 1, 128>}, {transform_indices = @transform_2, window_bounds = array<i64: 4, 128>}]} {
    %c0 = arith.constant 0 : index
    %c0_0 = arith.constant 0 : index
    %0 = vector.load %arg1[%c0, %c0_0] : memref<4x128xf32, #tpu.memory_space<vmem>>, vector<4x128xf32>
    %c0_1 = arith.constant 0 : index
    %c0_2 = arith.constant 0 : index
    %1 = vector.load %arg2[%c0_1, %c0_2] : memref<1x128xf32, #tpu.memory_space<vmem>>, vector<1x128xf32>
    %2 = vector.broadcast %1 : vector<1x128xf32> to vector<4x128xf32>
    %3 = arith.addf %0, %2 : vector<4x128xf32>
    %c0_3 = arith.constant 0 : index
    %c0_4 = arith.constant 0 : index
    %4 = vector.load %arg3[%c0_3, %c0_4] : memref<4x128xf32, #tpu.memory_space<vmem>>, vector<4x128xf32>
    tpu.vector_store %arg3[%c0_3, %c0_4], %3 {strides = array<i32>} : memref<4x128xf32, #tpu.memory_space<vmem>>, vector<4x128xf32>,
    return
  }
  func.func @transform_0(%arg0: i32) -> (i32, i32) {
    %c0_i32 = arith.constant 0 : i32
    %c0_i32_0 = arith.constant 0 : i32
    return %arg0, %c0_i32 : i32, i32
  }
  func.func @transform_1(%arg0: i32) -> (i32, i32) {
    %c0_i32 = arith.constant 0 : i32
    %c0_i32_0 = arith.constant 0 : i32
    %c0_i32_1 = arith.constant 0 : i32
    return %c0_i32, %c0_i32_0 : i32, i32
  }
  func.func @transform_2(%arg0: i32) -> (i32, i32) {
    %c0_i32 = arith.constant 0 : i32
    %c0_i32_0 = arith.constant 0 : i32
    return %arg0, %c0_i32 : i32, i32
  }
}

</mosaic_0001>

<llo_original>
// kernel: tpu_custom_call.1
$region0: #{tpu_custom_call.1}
  #allocation0 [shape = 'u32[]', space=smem, size = 0x4, offset = 0x4, fixed_abs, tag = 'smem constant byte address 0x4 - core index']
  #allocation1 [shape = 'u32[144,128]{1,0:T(1,128)}', space=vmem, size = 0x12000, scoped, tag = 'internal scratch']
  %s0 = inlined_call_operand.hbm [shape: f32[4,128], index: 0, kind: input, shape index: {}]
  %s1 = inlined_call_operand.vmem [shape: f32[1,128], index: 1, kind: input, shape index: {}]
  %s2 = inlined_call_operand.hbm [shape: f32[4,128], index: 2, kind: output, shape index: {}]
  %s3 = sld [smem:[#allocation0]]
  $region22: #{tpu_custom_call.1} parent=0
    _
  %s5 = ssub.s32 1, %s3
  %s6 = scalar_select 0, %s5, %s3
  $region1: #{tpu_custom_call.1} parent=0
    #allocation2 [shape = 'u8[2048]{0}', space=vmem, size = 0x800, scoped, tag = 'input window, operand 0, single buffered']
    #allocation3 [shape = 's32[1]{0}', space=sflag, size = 0x4, scoped, tag = 'scoped memory for tpu_custom_call.1']
    #allocation4 [shape = 's32[1]{0}', space=sflag, size = 0x4, scoped, tag = 'scoped memory for tpu_custom_call.1']
    #allocation5 [shape = 'u8[2048]{0}', space=vmem, size = 0x800, scoped, tag = 'output window, operand 0, single buffered']
    %7 = vsyncpa [#allocation3], 0
    %8 = vsyncpa [#allocation4], 0
    // Predicated region
    $region2: #{tpu_custom_call.1} parent=1 // pred_check
      _
    $region3: #{tpu_custom_call.1} parent=1 // pred_check_branch
      %10 = sbr.rel (0) target = $region5
    $region4: #{tpu_custom_call.1} parent=1 // pred_region
      %s12 = ssub.s32 64, 64
      %13 = vsyncadd [#allocation3], %s12
      %s15 = sshll.u32 [#allocation2], 4
      %s16 = int_to_ptr.vmem [resolvable:$true] %s15
      %18 = dma.hbm_to_vmem [thread:$0]  %s0, 64, %s16, [#allocation3]
    $region5: #{tpu_custom_call.1} parent=1 // pred_fallthru
      _
    // Predicated region
    $region6: #{tpu_custom_call.1} parent=1 // pred_check
      _
    $region7: #{tpu_custom_call.1} parent=1 // pred_check_branch
      %20 = sbr.rel (0) target = $region9
    $region8: #{tpu_custom_call.1} parent=1 // pred_region
      _
    $region9: #{tpu_custom_call.1} parent=1 // pred_fallthru
      _
    // Predicated region
    $region10: #{tpu_custom_call.1} parent=1 // pred_check
      _
    $region11: #{tpu_custom_call.1} parent=1 // pred_check_branch
      %22 = sbr.rel (0) target = $region13
    $region12: #{tpu_custom_call.1} parent=1 // pred_region
      %23 = dma.done [#allocation3], 64
    $region13: #{tpu_custom_call.1} parent=1 // pred_fallthru
      _
    %v24 = vld [vmem:[#allocation2] sm:$0xf]
    %v25 = vld [vmem:[%s1] sm:$0x1]
    %v27 = vlaneseq
    %v28 = vshrl.u32 %v27, 7
    %v29 = vsub.s32 0, %v28
    %v30 = vrot.slane %v25, %v29
    %v32 = vadd.f32 %v24, %v30
    %33 = vst [vmem:[#allocation5] sm:$0xf] %v32
    // Predicated region
    $region14: #{tpu_custom_call.1} parent=1 // pred_check
      _
    $region15: #{tpu_custom_call.1} parent=1 // pred_check_branch
      %35 = sbr.rel (0) target = $region17
    $region16: #{tpu_custom_call.1} parent=1 // pred_region
      %s37 = ssub.s32 64, 64
      %38 = vsyncadd [#allocation4], %s37
      %s40 = sshll.u32 [#allocation5], 4
      %s41 = int_to_ptr.vmem [resolvable:$true] %s40
      %43 = dma.vmem_to_hbm [thread:$0]  %s41, 64, %s2, [#allocation4]
    $region17: #{tpu_custom_call.1} parent=1 // pred_fallthru
      _
    // Predicated region
    $region18: #{tpu_custom_call.1} parent=1 // pred_check
      _
    $region19: #{tpu_custom_call.1} parent=1 // pred_check_branch
      %45 = sbr.rel (0) target = $region21
    $region20: #{tpu_custom_call.1} parent=1 // pred_region
      %46 = dma.done [#allocation4], 64
    $region21: #{tpu_custom_call.1} parent=1 // pred_fallthru
      _
    %47 = vsyncpa [#allocation3], 1
    %48 = vsyncpa [#allocation4], 1

</llo_original>
